<compile_context>
chip_gen: v7x
topology: tpu7x:2x2x1
jax: 0.10.0
libtpu: 0.0.40
codegen_flags: <defaults>
</compile_context>

<pallas_src>
import functools

import jax
import jax.numpy as jnp
from jax.experimental import pallas as pl
from jax.experimental.pallas import tpu as pltpu  # noqa: F401  (kept for future tiled version)


# ----------------------------- Pallas kernel --------------------------------

def _fused_gcn_kernel(a_ref, x_ref, w_ref, b_ref, o_ref, *,
                      num_layers, valid_out, apply_logsoftmax):
    """Fused GCN forward:  h_{l+1} = A_hat @ (h_l @ W_l) + b_l  (+ReLU),
    then log-softmax over the valid feature lanes of the last layer."""
    a = a_ref[...]                       # [N_pad, N_pad]
    h = x_ref[...]                       # [N_pad, F_pad]
    for layer in range(num_layers):      # static Python loop, traced once
        xw = jnp.dot(h, w_ref[layer], preferred_element_type=jnp.float32)
        h = jnp.dot(a, xw, preferred_element_type=jnp.float32) + b_ref[layer]
        if layer < num_layers - 1:
            h = jnp.maximum(h, 0.0)
    if apply_logsoftmax:
        # torch.nn.LogSoftmax() on 2-D -> softmax over dim=1 (features).
        # Padded lanes of the last layer are exactly zero (zero-padded W/b);
        # the explicit mask keeps this correct even if padding values change.
        col = jax.lax.broadcasted_iota(jnp.int32, h.shape, 1)
        hm = jnp.where(col < valid_out, h, -jnp.inf)
        m = jnp.max(hm, axis=-1, keepdims=True)
        lse = jnp.log(jnp.sum(jnp.exp(hm - m), axis=-1, keepdims=True)) + m
        h = h - lse
    o_ref[...] = h.astype(o_ref.dtype)


# ------------------------------ wrapper --------------------------------------

def _round_up(v, m):
    return ((v + m - 1) // m) * m


def pad_params(params):
    """Pad & stack layer weights/biases ONCE at init time (call-invariant).

    Returns (w_p [L, F_pad, F_pad], b_p [L, 1, F_pad]) with zero padding so
    every in-kernel tile is lane-dense (128-wide)."""
    f_pad = _round_up(max(max(w.shape) for w, _ in params), 128)
    w_p = jnp.stack([
        jnp.pad(w.astype(jnp.float32),
                ((0, f_pad - w.shape[0]), (0, f_pad - w.shape[1])))
        for w, _ in params])
    b_p = jnp.stack([
        jnp.pad(b.astype(jnp.float32), (0, f_pad - b.shape[0]))[None, :]
        for _, b in params])
    return w_p, b_p


@functools.partial(jax.jit, static_argnums=(4, 5))
def _gcn_forward_impl(a_hat, x, w_p, b_p, out_dim, apply_logsoftmax):
    """Jitted pad -> fused-kernel -> slice path (single dispatched executable)."""
    n = a_hat.shape[0]
    f_in = x.shape[1]
    num_layers, f_pad, _ = w_p.shape
    n_pad = _round_up(n, 128)            # lane-dense K for the A @ XW matmul

    a_p = jnp.pad(a_hat.astype(jnp.float32),
                  ((0, n_pad - n), (0, n_pad - n)))
    x_p = jnp.pad(x.astype(jnp.float32),
                  ((0, n_pad - n), (0, f_pad - f_in)))

    kernel = functools.partial(
        _fused_gcn_kernel,
        num_layers=num_layers,
        valid_out=out_dim,
        apply_logsoftmax=apply_logsoftmax)

    # Grid-less call: whole arrays resident in VMEM, no useless double-buffering
    # (a single grid step gets zero overlap from a second buffer).
    out_p = pl.pallas_call(
        kernel,
        out_shape=jax.ShapeDtypeStruct((n_pad, f_pad), jnp.float32),
    )(a_p, x_p, w_p, b_p)

    return out_p[:n, :out_dim]


def gcn_forward(a_hat, x, w_p, b_p, *, out_dim, return_embeds=False):
    """Run the fused GCN forward pass.

    a_hat: [N, N] dense normalized adjacency, x: [N, F_in],
    w_p/b_p: pre-padded stacked params from pad_params()."""
    return _gcn_forward_impl(a_hat, x, w_p, b_p, int(out_dim),
                             not return_embeds)


# --------------------------- plain-JAX glue ----------------------------------

def build_norm_adj(edge_index, edge_weight, num_nodes):
    """Dense D^{-1/2}(A+I)D^{-1/2} matching PyG gcn_norm (source_to_target)."""
    src = edge_index[0]
    dst = edge_index[1]
    a = jnp.zeros((num_nodes, num_nodes), jnp.float32)
    a = a.at[dst, src].add(edge_weight.astype(jnp.float32))
    a = a + jnp.eye(num_nodes, dtype=jnp.float32)          # self loops, weight 1
    deg = jnp.sum(a, axis=1)
    dinv = jnp.where(deg > 0, 1.0 / jnp.sqrt(deg), 0.0)
    return dinv[:, None] * a * dinv[None, :]


def init_params(key, input_dim, hidden_dim, output_dim, num_layers):
    dims = []
    d = input_dim
    for _ in range(num_layers - 1):
        dims.append((d, hidden_dim))
        d = hidden_dim
    dims.append((d, output_dim))
    params = []
    for (fin, fout) in dims:
        key, kw = jax.random.split(key)
        limit = jnp.sqrt(6.0 / (fin + fout))                # glorot uniform
        w = jax.random.uniform(kw, (fin, fout), jnp.float32, -limit, limit)
        b = jnp.zeros((fout,), jnp.float32)
        params.append((w, b))
    return params


def _reference(a_hat, x, params):
    h = x
    for i, (w, b) in enumerate(params):
        h = a_hat @ (h @ w) + b
        if i < len(params) - 1:
            h = jnp.maximum(h, 0.0)
    return jax.nn.log_softmax(h, axis=-1)


# -------------------------------- main ---------------------------------------

if __name__ == "__main__":
    key = jax.random.PRNGKey(0)

    N = 16                       # number of nodes
    input_dim, hidden_dim, output_dim = 8, 32, 8
    num_layers = 3

    # deterministic ring graph, both directions, with random edge weights
    src = jnp.arange(N, dtype=jnp.int32)
    dst = (src + 1) % N
    edge_index = jnp.stack(
        [jnp.concatenate([src, dst]), jnp.concatenate([dst, src])], axis=0)
    key, k_w, k_x, k_p = jax.random.split(key, 4)
    edge_attr = jax.random.uniform(
        k_w, (edge_index.shape[1],), jnp.float32, 0.5, 1.5)
    x = jax.random.normal(k_x, (N, input_dim), dtype=jnp.float32)

    a_hat = build_norm_adj(edge_index, edge_attr, N)
    params = init_params(k_p, input_dim, hidden_dim, output_dim, num_layers)

    # Padded/stacked params built ONCE here (init time), not per forward call.
    w_p, b_p = pad_params(params)

    # dropout path: whether_dropout=False (eval) -> no-op, not emitted.
    out = gcn_forward(a_hat, x, w_p, b_p, out_dim=output_dim,
                      return_embeds=False)
    out = jax.block_until_ready(out)

    ref = _reference(a_hat, x, params)
    assert out.shape == (N, output_dim)
    assert jnp.max(jnp.abs(out - ref)) < 1e-4, "mismatch vs. pure-JAX reference"

    print("KERNEL_OK")
</pallas_src>

<mosaic_0001>
module attributes {stable_mosaic.version = 11 : i64} {
  func.func @_fused_gcn_kernel(%arg0: memref<128x128xf32, #tpu.memory_space<vmem>>, %arg1: memref<128x128xf32, #tpu.memory_space<vmem>>, %arg2: memref<3x128x128xf32, #tpu.memory_space<vmem>>, %arg3: memref<3x1x128xf32, #tpu.memory_space<vmem>>, %arg4: memref<128x128xf32, #tpu.memory_space<vmem>>) attributes {dimension_semantics = [], scalar_prefetch = 0 : i64, scratch_operands = 0 : i64, tpu.core_type = #tpu.core_type<tc>} {
    %c0 = arith.constant 0 : index
    %c0_0 = arith.constant 0 : index
    %0 = vector.load %arg0[%c0, %c0_0] : memref<128x128xf32, #tpu.memory_space<vmem>>, vector<128x128xf32>
    %c0_1 = arith.constant 0 : index
    %c0_2 = arith.constant 0 : index
    %1 = vector.load %arg1[%c0_1, %c0_2] : memref<128x128xf32, #tpu.memory_space<vmem>>, vector<128x128xf32>
    %c0_3 = arith.constant 0 : index
    %c0_4 = arith.constant 0 : index
    %c0_5 = arith.constant 0 : index
    %2 = vector.load %arg2[%c0_3, %c0_4, %c0_5] : memref<3x128x128xf32, #tpu.memory_space<vmem>>, vector<1x128x128xf32>
    %3 = vector.shape_cast %2 : vector<1x128x128xf32> to vector<128x128xf32>
    %cst = arith.constant dense<0.000000e+00> : vector<128x128xf32>
    %4 = tpu.matmul %1, %3, %cst {dimension_numbers = #tpu.dot_dimension_numbers<[1], [0], [0], [1], [0, 0, 1, 1], [], []>} : vector<128x128xf32>, vector<128x128xf32>, vector<128x128xf32> -> vector<128x128xf32>
    %cst_6 = arith.constant dense<0.000000e+00> : vector<128x128xf32>
    %5 = tpu.matmul %0, %4, %cst_6 {dimension_numbers = #tpu.dot_dimension_numbers<[1], [0], [0], [1], [0, 0, 1, 1], [], []>} : vector<128x128xf32>, vector<128x128xf32>, vector<128x128xf32> -> vector<128x128xf32>
    %c0_7 = arith.constant 0 : index
    %c0_8 = arith.constant 0 : index
    %c0_9 = arith.constant 0 : index
    %6 = vector.load %arg3[%c0_7, %c0_8, %c0_9] : memref<3x1x128xf32, #tpu.memory_space<vmem>>, vector<1x1x128xf32>
    %7 = vector.shape_cast %6 : vector<1x1x128xf32> to vector<1x128xf32>
    %8 = vector.broadcast %7 : vector<1x128xf32> to vector<128x128xf32>
    %9 = arith.addf %5, %8 : vector<128x128xf32>
    %cst_10 = arith.constant 0.000000e+00 : f32
    %10 = vector.broadcast %cst_10 : f32 to vector<128x128xf32>
    %11 = arith.maximumf %9, %10 : vector<128x128xf32>
    %c1 = arith.constant 1 : index
    %c0_11 = arith.constant 0 : index
    %c0_12 = arith.constant 0 : index
    %12 = vector.load %arg2[%c1, %c0_11, %c0_12] : memref<3x128x128xf32, #tpu.memory_space<vmem>>, vector<1x128x128xf32>
    %13 = vector.shape_cast %12 : vector<1x128x128xf32> to vector<128x128xf32>
    %cst_13 = arith.constant dense<0.000000e+00> : vector<128x128xf32>
    %14 = tpu.matmul %11, %13, %cst_13 {dimension_numbers = #tpu.dot_dimension_numbers<[1], [0], [0], [1], [0, 0, 1, 1], [], []>} : vector<128x128xf32>, vector<128x128xf32>, vector<128x128xf32> -> vector<128x128xf32>
    %cst_14 = arith.constant dense<0.000000e+00> : vector<128x128xf32>
    %15 = tpu.matmul %0, %14, %cst_14 {dimension_numbers = #tpu.dot_dimension_numbers<[1], [0], [0], [1], [0, 0, 1, 1], [], []>} : vector<128x128xf32>, vector<128x128xf32>, vector<128x128xf32> -> vector<128x128xf32>
    %c1_15 = arith.constant 1 : index
    %c0_16 = arith.constant 0 : index
    %c0_17 = arith.constant 0 : index
    %16 = vector.load %arg3[%c1_15, %c0_16, %c0_17] : memref<3x1x128xf32, #tpu.memory_space<vmem>>, vector<1x1x128xf32>
    %17 = vector.shape_cast %16 : vector<1x1x128xf32> to vector<1x128xf32>
    %18 = vector.broadcast %17 : vector<1x128xf32> to vector<128x128xf32>
    %19 = arith.addf %15, %18 : vector<128x128xf32>
    %cst_18 = arith.constant 0.000000e+00 : f32
    %20 = vector.broadcast %cst_18 : f32 to vector<128x128xf32>
    %21 = arith.maximumf %19, %20 : vector<128x128xf32>
    %c2 = arith.constant 2 : index
    %c0_19 = arith.constant 0 : index
    %c0_20 = arith.constant 0 : index
    %22 = vector.load %arg2[%c2, %c0_19, %c0_20] : memref<3x128x128xf32, #tpu.memory_space<vmem>>, vector<1x128x128xf32>
    %23 = vector.shape_cast %22 : vector<1x128x128xf32> to vector<128x128xf32>
    %cst_21 = arith.constant dense<0.000000e+00> : vector<128x128xf32>
    %24 = tpu.matmul %21, %23, %cst_21 {dimension_numbers = #tpu.dot_dimension_numbers<[1], [0], [0], [1], [0, 0, 1, 1], [], []>} : vector<128x128xf32>, vector<128x128xf32>, vector<128x128xf32> -> vector<128x128xf32>
    %cst_22 = arith.constant dense<0.000000e+00> : vector<128x128xf32>
    %25 = tpu.matmul %0, %24, %cst_22 {dimension_numbers = #tpu.dot_dimension_numbers<[1], [0], [0], [1], [0, 0, 1, 1], [], []>} : vector<128x128xf32>, vector<128x128xf32>, vector<128x128xf32> -> vector<128x128xf32>
    %c2_23 = arith.constant 2 : index
    %c0_24 = arith.constant 0 : index
    %c0_25 = arith.constant 0 : index
    %26 = vector.load %arg3[%c2_23, %c0_24, %c0_25] : memref<3x1x128xf32, #tpu.memory_space<vmem>>, vector<1x1x128xf32>
    %27 = vector.shape_cast %26 : vector<1x1x128xf32> to vector<1x128xf32>
    %28 = vector.broadcast %27 : vector<1x128xf32> to vector<128x128xf32>
    %29 = arith.addf %25, %28 : vector<128x128xf32>
    %30 = tpu.iota {dimensions = array<i32: 1>} : vector<128x128xi32>
    %c8_i32 = arith.constant 8 : i32
    %31 = vector.broadcast %c8_i32 : i32 to vector<128x128xi32>
    %32 = arith.cmpi slt, %30, %31 : vector<128x128xi32>
    %cst_26 = arith.constant 0xFF800000 : f32
    %33 = vector.broadcast %cst_26 : f32 to vector<128x128xf32>
    %34 = arith.select %32, %29, %33 : vector<128x128xi1>, vector<128x128xf32>
    %cst_27 = arith.constant dense<0xFF800000> : vector<128xf32>
    %35 = vector.multi_reduction <maximumf>, %34, %cst_27 [1] : vector<128x128xf32> to vector<128xf32>
    %36 = vector.shape_cast %35 : vector<128xf32> to vector<128x1xf32>
    %37 = vector.broadcast %36 : vector<128x1xf32> to vector<128x128xf32>
    %38 = arith.subf %34, %37 : vector<128x128xf32>
    %39 = math.exp %38 : vector<128x128xf32>
    %cst_28 = arith.constant dense<0.000000e+00> : vector<128xf32>
    %40 = vector.multi_reduction <add>, %39, %cst_28 [1] : vector<128x128xf32> to vector<128xf32>
    %41 = vector.shape_cast %40 : vector<128xf32> to vector<128x1xf32>
    %42 = math.log %41 : vector<128x1xf32>
    %43 = arith.addf %42, %36 : vector<128x1xf32>
    %44 = vector.broadcast %43 : vector<128x1xf32> to vector<128x128xf32>
    %45 = arith.subf %29, %44 : vector<128x128xf32>
    %c0_29 = arith.constant 0 : index
    %c0_30 = arith.constant 0 : index
    %46 = vector.load %arg4[%c0_29, %c0_30] : memref<128x128xf32, #tpu.memory_space<vmem>>, vector<128x128xf32>
    tpu.vector_store %arg4[%c0_29, %c0_30], %45 {strides = array<i32>} : memref<128x128xf32, #tpu.memory_space<vmem>>, vector<128x128xf32>,
    return
  }
}

</mosaic_0001>

<llo_original>
// kernel: _gcn_forward_impl.1
$region0: #{_gcn_forward_impl.1}
  #allocation0 [shape = 'u32[]', space=smem, size = 0x4, offset = 0x4, fixed_abs, tag = 'smem constant byte address 0x4 - core index']
  #allocation1 [shape = 'u32[144,128]{1,0:T(1,128)}', space=vmem, size = 0x12000, scoped, tag = 'internal scratch']
  %s0 = inlined_call_operand.vmem [shape: f32[128,128], index: 0, kind: input, shape index: {}]
  %s1 = inlined_call_operand.vmem [shape: f32[128,128], index: 1, kind: input, shape index: {}]
  %s2 = inlined_call_operand.hbm [shape: f32[3,128,128], index: 2, kind: input, shape index: {}]
  %s3 = inlined_call_operand.vmem [shape: f32[3,1,128], index: 3, kind: input, shape index: {}]
  %s4 = inlined_call_operand.vmem [shape: f32[128,128], index: 4, kind: output, shape index: {}]
  %s5 = sld [smem:[#allocation0]]
  $region30: #{_gcn_forward_impl.1} parent=0
    _
  %s7 = ssub.s32 1, %s5
  %s8 = scalar_select 0, %s7, %s5
  $region1: #{_gcn_forward_impl.1} parent=0
    #allocation2 [shape = 'u8[196608]{0}', space=vmem, size = 0x30000, scoped, tag = 'input window, operand 2, single buffered']
    #allocation3 [shape = 's32[1]{0}', space=sflag, size = 0x4, scoped, tag = 'scoped memory for _gcn_forward_impl.1']
    %9 = vsyncpa [#allocation3], 0
    // Predicated region
    $region2: #{_gcn_forward_impl.1} parent=1 // pred_check
      _
    $region3: #{_gcn_forward_impl.1} parent=1 // pred_check_branch
      %11 = sbr.rel (0) target = $region5
    $region4: #{_gcn_forward_impl.1} parent=1 // pred_region
      _
    $region5: #{_gcn_forward_impl.1} parent=1 // pred_fallthru
      _
    // Predicated region
    $region6: #{_gcn_forward_impl.1} parent=1 // pred_check
      _
    $region7: #{_gcn_forward_impl.1} parent=1 // pred_check_branch
      %13 = sbr.rel (0) target = $region9
    $region8: #{_gcn_forward_impl.1} parent=1 // pred_region
      _
    $region9: #{_gcn_forward_impl.1} parent=1 // pred_fallthru
      _
    // Predicated region
    $region10: #{_gcn_forward_impl.1} parent=1 // pred_check
      _
    $region11: #{_gcn_forward_impl.1} parent=1 // pred_check_branch
      %15 = sbr.rel (0) target = $region13
    $region12: #{_gcn_forward_impl.1} parent=1 // pred_region
      %s17 = ssub.s32 6144, 6144
      %18 = vsyncadd [#allocation3], %s17
      %s19 = sshll.u32 [#allocation2], 4
      %s20 = int_to_ptr.vmem [resolvable:$true] %s19
      %25 = dma.hbm_to_vmem [thread:$0]  %s2, 6144, %s20, [#allocation3], 128, 128, 8
    $region13: #{_gcn_forward_impl.1} parent=1 // pred_fallthru
      _
    // Predicated region
    $region14: #{_gcn_forward_impl.1} parent=1 // pred_check
      _
    $region15: #{_gcn_forward_impl.1} parent=1 // pred_check_branch
      %27 = sbr.rel (0) target = $region17
    $region16: #{_gcn_forward_impl.1} parent=1 // pred_region
      _
    $region17: #{_gcn_forward_impl.1} parent=1 // pred_fallthru
      _
    // Predicated region
    $region18: #{_gcn_forward_impl.1} parent=1 // pred_check
      _
    $region19: #{_gcn_forward_impl.1} parent=1 // pred_check_branch
      %29 = sbr.rel (0) target = $region21
    $region20: #{_gcn_forward_impl.1} parent=1 // pred_region
      %30 = dma.done [#allocation3], 6144
    $region21: #{_gcn_forward_impl.1} parent=1 // pred_fallthru
      _
    %v31 = vld [vmem:[%s0] sm:$0xff]
    %v32 = vld [vmem:[%s0 + $0x8] sm:$0xff]
    %v33 = vld [vmem:[%s0 + $0x10] sm:$0xff]
    %v34 = vld [vmem:[%s0 + $0x18] sm:$0xff]
    %v35 = vld [vmem:[%s0 + $0x20] sm:$0xff]
    %v36 = vld [vmem:[%s0 + $0x28] sm:$0xff]
    %v37 = vld [vmem:[%s0 + $0x30] sm:$0xff]
    %v38 = vld [vmem:[%s0 + $0x38] sm:$0xff]
    %v39 = vld [vmem:[%s0 + $0x40] sm:$0xff]
    %v40 = vld [vmem:[%s0 + $0x48] sm:$0xff]
    %v41 = vld [vmem:[%s0 + $0x50] sm:$0xff]
    %v42 = vld [vmem:[%s0 + $0x58] sm:$0xff]
    %v43 = vld [vmem:[%s0 + $0x60] sm:$0xff]
    %v44 = vld [vmem:[%s0 + $0x68] sm:$0xff]
    %v45 = vld [vmem:[%s0 + $0x70] sm:$0xff]
    %v46 = vld [vmem:[%s0 + $0x78] sm:$0xff]
    %v47 = vld [vmem:[%s1] sm:$0xff]
    %v48 = vld [vmem:[%s1 + $0x8] sm:$0xff]
    %v49 = vld [vmem:[%s1 + $0x10] sm:$0xff]
    %v50 = vld [vmem:[%s1 + $0x18] sm:$0xff]
    %v51 = vld [vmem:[%s1 + $0x20] sm:$0xff]
    %v52 = vld [vmem:[%s1 + $0x28] sm:$0xff]
    %v53 = vld [vmem:[%s1 + $0x30] sm:$0xff]
    %v54 = vld [vmem:[%s1 + $0x38] sm:$0xff]
    %v55 = vld [vmem:[%s1 + $0x40] sm:$0xff]
    %v56 = vld [vmem:[%s1 + $0x48] sm:$0xff]
    %v57 = vld [vmem:[%s1 + $0x50] sm:$0xff]
    %v58 = vld [vmem:[%s1 + $0x58] sm:$0xff]
    %v59 = vld [vmem:[%s1 + $0x60] sm:$0xff]
    %v60 = vld [vmem:[%s1 + $0x68] sm:$0xff]
    %v61 = vld [vmem:[%s1 + $0x70] sm:$0xff]
    %v62 = vld [vmem:[%s1 + $0x78] sm:$0xff]
    %v63 = vld [vmem:[#allocation2] sm:$0xff]
    %v64 = vld [vmem:[#allocation2 + $0x8] sm:$0xff]
    %v65 = vld [vmem:[#allocation2 + $0x10] sm:$0xff]
    %v66 = vld [vmem:[#allocation2 + $0x18] sm:$0xff]
    %v67 = vld [vmem:[#allocation2 + $0x20] sm:$0xff]
    %v68 = vld [vmem:[#allocation2 + $0x28] sm:$0xff]
    %v69 = vld [vmem:[#allocation2 + $0x30] sm:$0xff]
    %v70 = vld [vmem:[#allocation2 + $0x38] sm:$0xff]
    %v71 = vld [vmem:[#allocation2 + $0x40] sm:$0xff]
    %v72 = vld [vmem:[#allocation2 + $0x48] sm:$0xff]
    %v73 = vld [vmem:[#allocation2 + $0x50] sm:$0xff]
    %v74 = vld [vmem:[#allocation2 + $0x58] sm:$0xff]
    %v75 = vld [vmem:[#allocation2 + $0x60] sm:$0xff]
    %v76 = vld [vmem:[#allocation2 + $0x68] sm:$0xff]
    %v77 = vld [vmem:[#allocation2 + $0x70] sm:$0xff]
    %v78 = vld [vmem:[#allocation2 + $0x78] sm:$0xff]
    %79 = vmatprep.subr.mxu0 0.0
    %80 = vmatpush1.msra.mxu0 %v63
    %81 = vmatprep.subr.mxu0 0.0
    %82 = vmatpush1.msra.mxu0 %v64
    %83 = vmatprep.subr.mxu0 0.0
    %84 = vmatpush1.msra.mxu0 %v65
    %85 = vmatprep.subr.mxu0 0.0
    %86 = vmatpush1.msra.mxu0 %v66
    %87 = vmatprep.subr.mxu0 0.0
    %88 = vmatpush1.msra.mxu0 %v67
    %89 = vmatprep.subr.mxu0 0.0
    %90 = vmatpush1.msra.mxu0 %v68
    %91 = vmatprep.subr.mxu0 0.0
    %92 = vmatpush1.msra.mxu0 %v69
    %93 = vmatprep.subr.mxu0 0.0
    %94 = vmatpush1.msra.mxu0 %v70
    %95 = vmatprep.subr.mxu0 0.0
    %96 = vmatpush1.msra.mxu0 %v71
    %97 = vmatprep.subr.mxu0 0.0
    %98 = vmatpush1.msra.mxu0 %v72
    %99 = vmatprep.subr.mxu0 0.0
    %100 = vmatpush1.msra.mxu0 %v73
    %101 = vmatprep.subr.mxu0 0.0
    %102 = vmatpush1.msra.mxu0 %v74
    %103 = vmatprep.subr.mxu0 0.0
    %104 = vmatpush1.msra.mxu0 %v75
    %105 = vmatprep.subr.mxu0 0.0
    %106 = vmatpush1.msra.mxu0 %v76
    %107 = vmatprep.subr.mxu0 0.0
    %108 = vmatpush1.msra.mxu0 %v77
    %109 = vmatprep.subr.mxu0 0.0
    %110 = vmatpush1.msra.mxu0 %v78
    %111 = vmatprep.subr.mxu0 0.0
    %112 = vmatpush1.msra.mxu0 0.0
    %113 = vmatprep.subr.mxu0 0.0
    %114 = vmatpush1.msra.mxu0 0.0
    %115 = vmatprep.subr.mxu0 0.0
    %116 = vmatpush1.msra.mxu0 0.0
    %117 = vmatprep.subr.mxu0 0.0
    %118 = vmatpush1.msra.mxu0 0.0
    %119 = vmatprep.subr.mxu0 0.0
    %120 = vmatpush1.msra.mxu0 0.0
    %121 = vmatprep.subr.mxu0 0.0
    %122 = vmatpush1.msra.mxu0 0.0
    %123 = vmatprep.subr.mxu0 0.0
    %124 = vmatpush1.msra.mxu0 0.0
    %125 = vmatprep.subr.mxu0 0.0
    %126 = vmatpush1.msra.mxu0 0.0
    %127 = vmatprep.subr.mxu0 0.0
    %128 = vmatpush1.msra.mxu0 0.0
    %129 = vmatprep.subr.mxu0 0.0
    %130 = vmatpush1.msra.mxu0 0.0
    %131 = vmatprep.subr.mxu0 0.0
    %132 = vmatpush1.msra.mxu0 0.0
    %133 = vmatprep.subr.mxu0 0.0
    %134 = vmatpush1.msra.mxu0 0.0
    %135 = vmatprep.subr.mxu0 0.0
    %136 = vmatpush1.msra.mxu0 0.0
    %137 = vmatprep.subr.mxu0 0.0
    %138 = vmatpush1.msra.mxu0 0.0
    %139 = vmatprep.subr.mxu0 0.0
    %140 = vmatpush1.msra.mxu0 0.0
    %141 = vmatprep.subr.mxu0 0.0
    %142 = vmatpush1.msra.mxu0 0.0
    %143 = vmatprep.mubr.f32.mxu0 0.0
    %144 = vmatmul.mubr.f32.gmra.mrb[0].mxu0 %v47
    %v145 = vpop.f32.mrb[0].mxu0
    %v146 = vadd.f32 0.0, %v145
    %v147 = vpop.f32.mrb[0].mxu0
    %148 = vmatprep.mubr.f32.mxu0 0.0
    %149 = vmatmul.mubr.f32.gmra.mrb[0].mxu0 %v48
    %v150 = vpop.f32.mrb[0].mxu0
    %v151 = vadd.f32 0.0, %v150
    %v152 = vpop.f32.mrb[0].mxu0
    %153 = vmatprep.mubr.f32.mxu0 0.0
    %154 = vmatmul.mubr.f32.gmra.mrb[0].mxu0 %v49
    %v155 = vpop.f32.mrb[0].mxu0
    %v156 = vadd.f32 0.0, %v155
    %v157 = vpop.f32.mrb[0].mxu0
    %158 = vmatprep.mubr.f32.mxu0 0.0
    %159 = vmatmul.mubr.f32.gmra.mrb[0].mxu0 %v50
    %v160 = vpop.f32.mrb[0].mxu0
    %v161 = vadd.f32 0.0, %v160
    %v162 = vpop.f32.mrb[0].mxu0
    %163 = vmatprep.mubr.f32.mxu0 0.0
    %164 = vmatmul.mubr.f32.gmra.mrb[0].mxu0 %v51
    %v165 = vpop.f32.mrb[0].mxu0
    %v166 = vadd.f32 0.0, %v165
    %v167 = vpop.f32.mrb[0].mxu0
    %168 = vmatprep.mubr.f32.mxu0 0.0
    %169 = vmatmul.mubr.f32.gmra.mrb[0].mxu0 %v52
    %v170 = vpop.f32.mrb[0].mxu0
    %v171 = vadd.f32 0.0, %v170
    %v172 = vpop.f32.mrb[0].mxu0
    %173 = vmatprep.mubr.f32.mxu0 0.0
    %174 = vmatmul.mubr.f32.gmra.mrb[0].mxu0 %v53
    %v175 = vpop.f32.mrb[0].mxu0
    %v176 = vadd.f32 0.0, %v175
    %v177 = vpop.f32.mrb[0].mxu0
    %178 = vmatprep.mubr.f32.mxu0 0.0
    %179 = vmatmul.mubr.f32.gmra.mrb[0].mxu0 %v54
    %v180 = vpop.f32.mrb[0].mxu0
    %v181 = vadd.f32 0.0, %v180
    %v182 = vpop.f32.mrb[0].mxu0
    %183 = vmatprep.mubr.f32.mxu0 0.0
    %184 = vmatmul.mubr.f32.gmra.mrb[0].mxu0 %v55
    %v185 = vpop.f32.mrb[0].mxu0
    %v186 = vadd.f32 0.0, %v185
    %v187 = vpop.f32.mrb[0].mxu0
    %188 = vmatprep.mubr.f32.mxu0 0.0
    %189 = vmatmul.mubr.f32.gmra.mrb[0].mxu0 %v56
    %v190 = vpop.f32.mrb[0].mxu0
    %v191 = vadd.f32 0.0, %v190
    %v192 = vpop.f32.mrb[0].mxu0
    %193 = vmatprep.mubr.f32.mxu0 0.0
    %194 = vmatmul.mubr.f32.gmra.mrb[0].mxu0 %v57
    %v195 = vpop.f32.mrb[0].mxu0
    %v196 = vadd.f32 0.0, %v195
    %v197 = vpop.f32.mrb[0].mxu0
    %198 = vmatprep.mubr.f32.mxu0 0.0
    %199 = vmatmul.mubr.f32.gmra.mrb[0].mxu0 %v58
    %v200 = vpop.f32.mrb[0].mxu0
    %v201 = vadd.f32 0.0, %v200
    %v202 = vpop.f32.mrb[0].mxu0
    %203 = vmatprep.mubr.f32.mxu0 0.0
    %204 = vmatmul.mubr.f32.gmra.mrb[0].mxu0 %v59
    %v205 = vpop.f32.mrb[0].mxu0
    %v206 = vadd.f32 0.0, %v205
    %v207 = vpop.f32.mrb[0].mxu0
    %208 = vmatprep.mubr.f32.mxu0 0.0
    %209 = vmatmul.mubr.f32.gmra.mrb[0].mxu0 %v60
    %v210 = vpop.f32.mrb[0].mxu0
    %v211 = vadd.f32 0.0, %v210
    %v212 = vpop.f32.mrb[0].mxu0
    %213 = vmatprep.mubr.f32.mxu0 0.0
    %214 = vmatmul.mubr.f32.gmra.mrb[0].mxu0 %v61
    %v215 = vpop.f32.mrb[0].mxu0
    %v216 = vadd.f32 0.0, %v215
    %v217 = vpop.f32.mrb[0].mxu0
    %218 = vmatprep.mubr.f32.mxu0 0.0
    %219 = vmatmul.mubr.f32.gmra.mrb[0].mxu0 %v62
    %v220 = vpop.f32.mrb[0].mxu0
    %v221 = vadd.f32 0.0, %v220
    %v222 = vpop.f32.mrb[0].mxu0
    %223 = vdwg.mxu0
    %v224 = vld [vmem:[%s3] sm:$0x1]
    %v226 = vlaneseq
    %v227 = vshrl.u32 %v226, 7
    %v228 = vsub.s32 0, %v227
    %v229 = vrot.slane %v224, %v228
    %231 = vmatprep.subr.mxu0 0.0
    %232 = vmatpush1.msra.mxu0 %v146
    %233 = vmatprep.subr.mxu0 0.0
    %234 = vmatpush1.msra.mxu0 %v151
    %235 = vmatprep.subr.mxu0 0.0
    %236 = vmatpush1.msra.mxu0 %v156
    %237 = vmatprep.subr.mxu0 0.0
    %238 = vmatpush1.msra.mxu0 %v161
    %239 = vmatprep.subr.mxu0 0.0
    %240 = vmatpush1.msra.mxu0 %v166
    %241 = vmatprep.subr.mxu0 0.0
    %242 = vmatpush1.msra.mxu0 %v171
    %243 = vmatprep.subr.mxu0 0.0
    %244 = vmatpush1.msra.mxu0 %v176
    %245 = vmatprep.subr.mxu0 0.0
    %246 = vmatpush1.msra.mxu0 %v181
    %247 = vmatprep.subr.mxu0 0.0
    %248 = vmatpush1.msra.mxu0 %v186
    %249 = vmatprep.subr.mxu0 0.0
    %250 = vmatpush1.msra.mxu0 %v191
    %251 = vmatprep.subr.mxu0 0.0
    %252 = vmatpush1.msra.mxu0 %v196
    %253 = vmatprep.subr.mxu0 0.0
    %254 = vmatpush1.msra.mxu0 %v201
    %255 = vmatprep.subr.mxu0 0.0
    %256 = vmatpush1.msra.mxu0 %v206
    %257 = vmatprep.subr.mxu0 0.0
    %258 = vmatpush1.msra.mxu0 %v211
    %259 = vmatprep.subr.mxu0 0.0
    %260 = vmatpush1.msra.mxu0 %v216
    %261 = vmatprep.subr.mxu0 0.0
    %262 = vmatpush1.msra.mxu0 %v221
    %263 = vmatprep.subr.mxu0 0.0
    %264 = vmatpush1.msra.mxu0 0.0
    %265 = vmatprep.subr.mxu0 0.0
    %266 = vmatpush1.msra.mxu0 0.0
    %267 = vmatprep.subr.mxu0 0.0
    %268 = vmatpush1.msra.mxu0 0.0
    %269 = vmatprep.subr.mxu0 0.0
    %270 = vmatpush1.msra.mxu0 0.0
    %271 = vmatprep.subr.mxu0 0.0
    %272 = vmatpush1.msra.mxu0 0.0
    %273 = vmatprep.subr.mxu0 0.0
    %274 = vmatpush1.msra.mxu0 0.0
    %275 = vmatprep.subr.mxu0 0.0
    %276 = vmatpush1.msra.mxu0 0.0
    %277 = vmatprep.subr.mxu0 0.0
    %278 = vmatpush1.msra.mxu0 0.0
    %279 = vmatprep.subr.mxu0 0.0
    %280 = vmatpush1.msra.mxu0 0.0
    %281 = vmatprep.subr.mxu0 0.0
    %282 = vmatpush1.msra.mxu0 0.0
    %283 = vmatprep.subr.mxu0 0.0
    %284 = vmatpush1.msra.mxu0 0.0
    %285 = vmatprep.subr.mxu0 0.0
    %286 = vmatpush1.msra.mxu0 0.0
    %287 = vmatprep.subr.mxu0 0.0
    %288 = vmatpush1.msra.mxu0 0.0
    %289 = vmatprep.subr.mxu0 0.0
    %290 = vmatpush1.msra.mxu0 0.0
    %291 = vmatprep.subr.mxu0 0.0
    %292 = vmatpush1.msra.mxu0 0.0
    %293 = vmatprep.subr.mxu0 0.0
    %294 = vmatpush1.msra.mxu0 0.0
    %295 = vmatprep.mubr.f32.mxu0 0.0
    %296 = vmatmul.mubr.f32.gmra.mrb[0].mxu0 %v31
    %v297 = vpop.f32.mrb[0].mxu0
    %v298 = vadd.f32 %v229, %v297
    %v299 = vpop.f32.mrb[0].mxu0
    %300 = vmatprep.mubr.f32.mxu0 0.0
    %301 = vmatmul.mubr.f32.gmra.mrb[0].mxu0 %v32
    %v302 = vpop.f32.mrb[0].mxu0
    %v303 = vadd.f32 %v229, %v302
    %v304 = vpop.f32.mrb[0].mxu0
    %305 = vmatprep.mubr.f32.mxu0 0.0
    %306 = vmatmul.mubr.f32.gmra.mrb[0].mxu0 %v33
    %v307 = vpop.f32.mrb[0].mxu0
    %v308 = vadd.f32 %v229, %v307
    %v309 = vpop.f32.mrb[0].mxu0
    %310 = vmatprep.mubr.f32.mxu0 0.0
    %311 = vmatmul.mubr.f32.gmra.mrb[0].mxu0 %v34
    %v312 = vpop.f32.mrb[0].mxu0
    %v313 = vadd.f32 %v229, %v312
    %v314 = vpop.f32.mrb[0].mxu0
    %315 = vmatprep.mubr.f32.mxu0 0.0
    %316 = vmatmul.mubr.f32.gmra.mrb[0].mxu0 %v35
    %v317 = vpop.f32.mrb[0].mxu0
    %v318 = vadd.f32 %v229, %v317
    %v319 = vpop.f32.mrb[0].mxu0
    %320 = vmatprep.mubr.f32.mxu0 0.0
    %321 = vmatmul.mubr.f32.gmra.mrb[0].mxu0 %v36
    %v322 = vpop.f32.mrb[0].mxu0
    %v323 = vadd.f32 %v229, %v322
    %v324 = vpop.f32.mrb[0].mxu0
    %325 = vmatprep.mubr.f32.mxu0 0.0
    %326 = vmatmul.mubr.f32.gmra.mrb[0].mxu0 %v37
    %v327 = vpop.f32.mrb[0].mxu0
    %v328 = vadd.f32 %v229, %v327
    %v329 = vpop.f32.mrb[0].mxu0
    %330 = vmatprep.mubr.f32.mxu0 0.0
    %331 = vmatmul.mubr.f32.gmra.mrb[0].mxu0 %v38
    %v332 = vpop.f32.mrb[0].mxu0
    %v333 = vadd.f32 %v229, %v332
    %v334 = vpop.f32.mrb[0].mxu0
    %335 = vmatprep.mubr.f32.mxu0 0.0
    %336 = vmatmul.mubr.f32.gmra.mrb[0].mxu0 %v39
    %v337 = vpop.f32.mrb[0].mxu0
    %v338 = vadd.f32 %v229, %v337
    %v339 = vpop.f32.mrb[0].mxu0
    %340 = vmatprep.mubr.f32.mxu0 0.0
    %341 = vmatmul.mubr.f32.gmra.mrb[0].mxu0 %v40
    %v342 = vpop.f32.mrb[0].mxu0
    %v343 = vadd.f32 %v229, %v342
    %v344 = vpop.f32.mrb[0].mxu0
    %345 = vmatprep.mubr.f32.mxu0 0.0
    %346 = vmatmul.mubr.f32.gmra.mrb[0].mxu0 %v41
    %v347 = vpop.f32.mrb[0].mxu0
    %v348 = vadd.f32 %v229, %v347
    %v349 = vpop.f32.mrb[0].mxu0
    %350 = vmatprep.mubr.f32.mxu0 0.0
    %351 = vmatmul.mubr.f32.gmra.mrb[0].mxu0 %v42
    %v352 = vpop.f32.mrb[0].mxu0
    %v353 = vadd.f32 %v229, %v352
    %v354 = vpop.f32.mrb[0].mxu0
    %355 = vmatprep.mubr.f32.mxu0 0.0
    %356 = vmatmul.mubr.f32.gmra.mrb[0].mxu0 %v43
    %v357 = vpop.f32.mrb[0].mxu0
    %v358 = vadd.f32 %v229, %v357
    %v359 = vpop.f32.mrb[0].mxu0
    %360 = vmatprep.mubr.f32.mxu0 0.0
    %361 = vmatmul.mubr.f32.gmra.mrb[0].mxu0 %v44
    %v362 = vpop.f32.mrb[0].mxu0
    %v363 = vadd.f32 %v229, %v362
    %v364 = vpop.f32.mrb[0].mxu0
    %365 = vmatprep.mubr.f32.mxu0 0.0
    %366 = vmatmul.mubr.f32.gmra.mrb[0].mxu0 %v45
    %v367 = vpop.f32.mrb[0].mxu0
    %v368 = vadd.f32 %v229, %v367
    %v369 = vpop.f32.mrb[0].mxu0
    %370 = vmatprep.mubr.f32.mxu0 0.0
    %371 = vmatmul.mubr.f32.gmra.mrb[0].mxu0 %v46
    %v372 = vpop.f32.mrb[0].mxu0
    %v373 = vadd.f32 %v229, %v372
    %v374 = vpop.f32.mrb[0].mxu0
    %375 = vdwg.mxu0
    %v376 = vmax.f32 %v298, 0.0
    %v377 = vmax.f32 %v303, 0.0
    %v378 = vmax.f32 %v308, 0.0
    %v379 = vmax.f32 %v313, 0.0
    %v380 = vmax.f32 %v318, 0.0
    %v381 = vmax.f32 %v323, 0.0
    %v382 = vmax.f32 %v328, 0.0
    %v383 = vmax.f32 %v333, 0.0
    %v384 = vmax.f32 %v338, 0.0
    %v385 = vmax.f32 %v343, 0.0
    %v386 = vmax.f32 %v348, 0.0
    %v387 = vmax.f32 %v353, 0.0
    %v388 = vmax.f32 %v358, 0.0
    %v389 = vmax.f32 %v363, 0.0
    %v390 = vmax.f32 %v368, 0.0
    %v391 = vmax.f32 %v373, 0.0
    %s392 = scalar_lea.vmem [#allocation2], 128
    %v393 = vld [vmem:[%s392] sm:$0xff]
    %v394 = vld [vmem:[%s392 + $0x8] sm:$0xff]
    %v395 = vld [vmem:[%s392 + $0x10] sm:$0xff]
    %v396 = vld [vmem:[%s392 + $0x18] sm:$0xff]
    %v397 = vld [vmem:[%s392 + $0x20] sm:$0xff]
    %v398 = vld [vmem:[%s392 + $0x28] sm:$0xff]
    %v399 = vld [vmem:[%s392 + $0x30] sm:$0xff]
    %v400 = vld [vmem:[%s392 + $0x38] sm:$0xff]
    %v401 = vld [vmem:[%s392 + $0x40] sm:$0xff]
    %v402 = vld [vmem:[%s392 + $0x48] sm:$0xff]
    %v403 = vld [vmem:[%s392 + $0x50] sm:$0xff]
    %v404 = vld [vmem:[%s392 + $0x58] sm:$0xff]
    %v405 = vld [vmem:[%s392 + $0x60] sm:$0xff]
    %v406 = vld [vmem:[%s392 + $0x68] sm:$0xff]
    %v407 = vld [vmem:[%s392 + $0x70] sm:$0xff]
    %v408 = vld [vmem:[%s392 + $0x78] sm:$0xff]
    %409 = vmatprep.subr.mxu0 0.0
    %410 = vmatpush1.msra.mxu0 %v393
    %411 = vmatprep.subr.mxu0 0.0
    %412 = vmatpush1.msra.mxu0 %v394
    %413 = vmatprep.subr.mxu0 0.0
    %414 = vmatpush1.msra.mxu0 %v395
    %415 = vmatprep.subr.mxu0 0.0
    %416 = vmatpush1.msra.mxu0 %v396
    %417 = vmatprep.subr.mxu0 0.0
    %418 = vmatpush1.msra.mxu0 %v397
    %419 = vmatprep.subr.mxu0 0.0
    %420 = vmatpush1.msra.mxu0 %v398
    %421 = vmatprep.subr.mxu0 0.0
    %422 = vmatpush1.msra.mxu0 %v399
    %423 = vmatprep.subr.mxu0 0.0
    %424 = vmatpush1.msra.mxu0 %v400
    %425 = vmatprep.subr.mxu0 0.0
    %426 = vmatpush1.msra.mxu0 %v401
    %427 = vmatprep.subr.mxu0 0.0
    %428 = vmatpush1.msra.mxu0 %v402
    %429 = vmatprep.subr.mxu0 0.0
    %430 = vmatpush1.msra.mxu0 %v403
    %431 = vmatprep.subr.mxu0 0.0
    %432 = vmatpush1.msra.mxu0 %v404
    %433 = vmatprep.subr.mxu0 0.0
    %434 = vmatpush1.msra.mxu0 %v405
    %435 = vmatprep.subr.mxu0 0.0
    %436 = vmatpush1.msra.mxu0 %v406
    %437 = vmatprep.subr.mxu0 0.0
    %438 = vmatpush1.msra.mxu0 %v407
    %439 = vmatprep.subr.mxu0 0.0
    %440 = vmatpush1.msra.mxu0 %v408
    %441 = vmatprep.subr.mxu0 0.0
    %442 = vmatpush1.msra.mxu0 0.0
    %443 = vmatprep.subr.mxu0 0.0
    %444 = vmatpush1.msra.mxu0 0.0
    %445 = vmatprep.subr.mxu0 0.0
    %446 = vmatpush1.msra.mxu0 0.0
    %447 = vmatprep.subr.mxu0 0.0
    %448 = vmatpush1.msra.mxu0 0.0
    %449 = vmatprep.subr.mxu0 0.0
    %450 = vmatpush1.msra.mxu0 0.0
    %451 = vmatprep.subr.mxu0 0.0
    %452 = vmatpush1.msra.mxu0 0.0
    %453 = vmatprep.subr.mxu0 0.0
    %454 = vmatpush1.msra.mxu0 0.0
    %455 = vmatprep.subr.mxu0 0.0
    %456 = vmatpush1.msra.mxu0 0.0
    %457 = vmatprep.subr.mxu0 0.0
    %458 = vmatpush1.msra.mxu0 0.0
    %459 = vmatprep.subr.mxu0 0.0
    %460 = vmatpush1.msra.mxu0 0.0
    %461 = vmatprep.subr.mxu0 0.0
    %462 = vmatpush1.msra.mxu0 0.0
    %463 = vmatprep.subr.mxu0 0.0
    %464 = vmatpush1.msra.mxu0 0.0
    %465 = vmatprep.subr.mxu0 0.0
    %466 = vmatpush1.msra.mxu0 0.0
    %467 = vmatprep.subr.mxu0 0.0
    %468 = vmatpush1.msra.mxu0 0.0
    %469 = vmatprep.subr.mxu0 0.0
    %470 = vmatpush1.msra.mxu0 0.0
    %471 = vmatprep.subr.mxu0 0.0
    %472 = vmatpush1.msra.mxu0 0.0
    %473 = vmatprep.mubr.f32.mxu0 0.0
    %474 = vmatmul.mubr.f32.gmra.mrb[0].mxu0 %v376
    %v475 = vpop.f32.mrb[0].mxu0
    %v476 = vadd.f32 0.0, %v475
    %v477 = vpop.f32.mrb[0].mxu0
    %478 = vmatprep.mubr.f32.mxu0 0.0
    %479 = vmatmul.mubr.f32.gmra.mrb[0].mxu0 %v377
    %v480 = vpop.f32.mrb[0].mxu0
    %v481 = vadd.f32 0.0, %v480
    %v482 = vpop.f32.mrb[0].mxu0
    %483 = vmatprep.mubr.f32.mxu0 0.0
    %484 = vmatmul.mubr.f32.gmra.mrb[0].mxu0 %v378
    %v485 = vpop.f32.mrb[0].mxu0
    %v486 = vadd.f32 0.0, %v485
    %v487 = vpop.f32.mrb[0].mxu0
    %488 = vmatprep.mubr.f32.mxu0 0.0
    %489 = vmatmul.mubr.f32.gmra.mrb[0].mxu0 %v379
    %v490 = vpop.f32.mrb[0].mxu0
    %v491 = vadd.f32 0.0, %v490
    %v492 = vpop.f32.mrb[0].mxu0
    %493 = vmatprep.mubr.f32.mxu0 0.0
    %494 = vmatmul.mubr.f32.gmra.mrb[0].mxu0 %v380
    %v495 = vpop.f32.mrb[0].mxu0
    %v496 = vadd.f32 0.0, %v495
    %v497 = vpop.f32.mrb[0].mxu0
    %498 = vmatprep.mubr.f32.mxu0 0.0
    %499 = vmatmul.mubr.f32.gmra.mrb[0].mxu0 %v381
    %v500 = vpop.f32.mrb[0].mxu0
    %v501 = vadd.f32 0.0, %v500
    %v502 = vpop.f32.mrb[0].mxu0
    %503 = vmatprep.mubr.f32.mxu0 0.0
    %504 = vmatmul.mubr.f32.gmra.mrb[0].mxu0 %v382
    %v505 = vpop.f32.mrb[0].mxu0
    %v506 = vadd.f32 0.0, %v505
    %v507 = vpop.f32.mrb[0].mxu0
    %508 = vmatprep.mubr.f32.mxu0 0.0
    %509 = vmatmul.mubr.f32.gmra.mrb[0].mxu0 %v383
    %v510 = vpop.f32.mrb[0].mxu0
    %v511 = vadd.f32 0.0, %v510
    %v512 = vpop.f32.mrb[0].mxu0
    %513 = vmatprep.mubr.f32.mxu0 0.0
    %514 = vmatmul.mubr.f32.gmra.mrb[0].mxu0 %v384
    %v515 = vpop.f32.mrb[0].mxu0
    %v516 = vadd.f32 0.0, %v515
    %v517 = vpop.f32.mrb[0].mxu0
    %518 = vmatprep.mubr.f32.mxu0 0.0
    %519 = vmatmul.mubr.f32.gmra.mrb[0].mxu0 %v385
    %v520 = vpop.f32.mrb[0].mxu0
    %v521 = vadd.f32 0.0, %v520
    %v522 = vpop.f32.mrb[0].mxu0
    %523 = vmatprep.mubr.f32.mxu0 0.0
    %524 = vmatmul.mubr.f32.gmra.mrb[0].mxu0 %v386
    %v525 = vpop.f32.mrb[0].mxu0
    %v526 = vadd.f32 0.0, %v525
    %v527 = vpop.f32.mrb[0].mxu0
    %528 = vmatprep.mubr.f32.mxu0 0.0
    %529 = vmatmul.mubr.f32.gmra.mrb[0].mxu0 %v387
    %v530 = vpop.f32.mrb[0].mxu0
    %v531 = vadd.f32 0.0, %v530
    %v532 = vpop.f32.mrb[0].mxu0
    %533 = vmatprep.mubr.f32.mxu0 0.0
    %534 = vmatmul.mubr.f32.gmra.mrb[0].mxu0 %v388
    %v535 = vpop.f32.mrb[0].mxu0
    %v536 = vadd.f32 0.0, %v535
    %v537 = vpop.f32.mrb[0].mxu0
    %538 = vmatprep.mubr.f32.mxu0 0.0
    %539 = vmatmul.mubr.f32.gmra.mrb[0].mxu0 %v389
    %v540 = vpop.f32.mrb[0].mxu0
    %v541 = vadd.f32 0.0, %v540
    %v542 = vpop.f32.mrb[0].mxu0
    %543 = vmatprep.mubr.f32.mxu0 0.0
    %544 = vmatmul.mubr.f32.gmra.mrb[0].mxu0 %v390
    %v545 = vpop.f32.mrb[0].mxu0
    %v546 = vadd.f32 0.0, %v545
    %v547 = vpop.f32.mrb[0].mxu0
    %548 = vmatprep.mubr.f32.mxu0 0.0
    %549 = vmatmul.mubr.f32.gmra.mrb[0].mxu0 %v391
    %v550 = vpop.f32.mrb[0].mxu0
    %v551 = vadd.f32 0.0, %v550
    %v552 = vpop.f32.mrb[0].mxu0
    %553 = vdwg.mxu0
    %s554 = scalar_lea.vmem %s3, 1
    %v555 = vld [vmem:[%s554] sm:$0x1]
    %v557 = vlaneseq
    %v558 = vshrl.u32 %v557, 7
    %v559 = vsub.s32 0, %v558
    %v560 = vrot.slane %v555, %v559
    %562 = vmatprep.subr.mxu0 0.0
    %563 = vmatpush1.msra.mxu0 %v476
    %564 = vmatprep.subr.mxu0 0.0
    %565 = vmatpush1.msra.mxu0 %v481
    %566 = vmatprep.subr.mxu0 0.0
    %567 = vmatpush1.msra.mxu0 %v486
    %568 = vmatprep.subr.mxu0 0.0
    %569 = vmatpush1.msra.mxu0 %v491
    %570 = vmatprep.subr.mxu0 0.0
    %571 = vmatpush1.msra.mxu0 %v496
    %572 = vmatprep.subr.mxu0 0.0
    %573 = vmatpush1.msra.mxu0 %v501
    %574 = vmatprep.subr.mxu0 0.0
    %575 = vmatpush1.msra.mxu0 %v506
    %576 = vmatprep.subr.mxu0 0.0
    %577 = vmatpush1.msra.mxu0 %v511
    %578 = vmatprep.subr.mxu0 0.0
    %579 = vmatpush1.msra.mxu0 %v516
    %580 = vmatprep.subr.mxu0 0.0
    %581 = vmatpush1.msra.mxu0 %v521
    %582 = vmatprep.subr.mxu0 0.0
    %583 = vmatpush1.msra.mxu0 %v526
    %584 = vmatprep.subr.mxu0 0.0
    %585 = vmatpush1.msra.mxu0 %v531
    %586 = vmatprep.subr.mxu0 0.0
    %587 = vmatpush1.msra.mxu0 %v536
    %588 = vmatprep.subr.mxu0 0.0
    %589 = vmatpush1.msra.mxu0 %v541
    %590 = vmatprep.subr.mxu0 0.0
    %591 = vmatpush1.msra.mxu0 %v546
    %592 = vmatprep.subr.mxu0 0.0
    %593 = vmatpush1.msra.mxu0 %v551
    %594 = vmatprep.subr.mxu0 0.0
    %595 = vmatpush1.msra.mxu0 0.0
    %596 = vmatprep.subr.mxu0 0.0
    %597 = vmatpush1.msra.mxu0 0.0
    %598 = vmatprep.subr.mxu0 0.0
    %599 = vmatpush1.msra.mxu0 0.0
    %600 = vmatprep.subr.mxu0 0.0
    %601 = vmatpush1.msra.mxu0 0.0
    %602 = vmatprep.subr.mxu0 0.0
    %603 = vmatpush1.msra.mxu0 0.0
    %604 = vmatprep.subr.mxu0 0.0
    %605 = vmatpush1.msra.mxu0 0.0
    %606 = vmatprep.subr.mxu0 0.0
    %607 = vmatpush1.msra.mxu0 0.0
    %608 = vmatprep.subr.mxu0 0.0
    %609 = vmatpush1.msra.mxu0 0.0
    %610 = vmatprep.subr.mxu0 0.0
    %611 = vmatpush1.msra.mxu0 0.0
    %612 = vmatprep.subr.mxu0 0.0
    %613 = vmatpush1.msra.mxu0 0.0
    %614 = vmatprep.subr.mxu0 0.0
    %615 = vmatpush1.msra.mxu0 0.0
    %616 = vmatprep.subr.mxu0 0.0
    %617 = vmatpush1.msra.mxu0 0.0
    %618 = vmatprep.subr.mxu0 0.0
    %619 = vmatpush1.msra.mxu0 0.0
    %620 = vmatprep.subr.mxu0 0.0
    %621 = vmatpush1.msra.mxu0 0.0
    %622 = vmatprep.subr.mxu0 0.0
    %623 = vmatpush1.msra.mxu0 0.0
    %624 = vmatprep.subr.mxu0 0.0
    %625 = vmatpush1.msra.mxu0 0.0
    %626 = vmatprep.mubr.f32.mxu0 0.0
    %627 = vmatmul.mubr.f32.gmra.mrb[0].mxu0 %v31
    %v628 = vpop.f32.mrb[0].mxu0
    %v629 = vadd.f32 %v560, %v628
    %v630 = vpop.f32.mrb[0].mxu0
    %631 = vmatprep.mubr.f32.mxu0 0.0
    %632 = vmatmul.mubr.f32.gmra.mrb[0].mxu0 %v32
    %v633 = vpop.f32.mrb[0].mxu0
    %v634 = vadd.f32 %v560, %v633
    %v635 = vpop.f32.mrb[0].mxu0
    %636 = vmatprep.mubr.f32.mxu0 0.0
    %637 = vmatmul.mubr.f32.gmra.mrb[0].mxu0 %v33
    %v638 = vpop.f32.mrb[0].mxu0
    %v639 = vadd.f32 %v560, %v638
    %v640 = vpop.f32.mrb[0].mxu0
    %641 = vmatprep.mubr.f32.mxu0 0.0
    %642 = vmatmul.mubr.f32.gmra.mrb[0].mxu0 %v34
    %v643 = vpop.f32.mrb[0].mxu0
    %v644 = vadd.f32 %v560, %v643
    %v645 = vpop.f32.mrb[0].mxu0
    %646 = vmatprep.mubr.f32.mxu0 0.0
    %647 = vmatmul.mubr.f32.gmra.mrb[0].mxu0 %v35
    %v648 = vpop.f32.mrb[0].mxu0
    %v649 = vadd.f32 %v560, %v648
    %v650 = vpop.f32.mrb[0].mxu0
    %651 = vmatprep.mubr.f32.mxu0 0.0
    %652 = vmatmul.mubr.f32.gmra.mrb[0].mxu0 %v36
    %v653 = vpop.f32.mrb[0].mxu0
    %v654 = vadd.f32 %v560, %v653
    %v655 = vpop.f32.mrb[0].mxu0
    %656 = vmatprep.mubr.f32.mxu0 0.0
    %657 = vmatmul.mubr.f32.gmra.mrb[0].mxu0 %v37
    %v658 = vpop.f32.mrb[0].mxu0
    %v659 = vadd.f32 %v560, %v658
    %v660 = vpop.f32.mrb[0].mxu0
    %661 = vmatprep.mubr.f32.mxu0 0.0
    %662 = vmatmul.mubr.f32.gmra.mrb[0].mxu0 %v38
    %v663 = vpop.f32.mrb[0].mxu0
    %v664 = vadd.f32 %v560, %v663
    %v665 = vpop.f32.mrb[0].mxu0
    %666 = vmatprep.mubr.f32.mxu0 0.0
    %667 = vmatmul.mubr.f32.gmra.mrb[0].mxu0 %v39
    %v668 = vpop.f32.mrb[0].mxu0
    %v669 = vadd.f32 %v560, %v668
    %v670 = vpop.f32.mrb[0].mxu0
    %671 = vmatprep.mubr.f32.mxu0 0.0
    %672 = vmatmul.mubr.f32.gmra.mrb[0].mxu0 %v40
    %v673 = vpop.f32.mrb[0].mxu0
    %v674 = vadd.f32 %v560, %v673
    %v675 = vpop.f32.mrb[0].mxu0
    %676 = vmatprep.mubr.f32.mxu0 0.0
    %677 = vmatmul.mubr.f32.gmra.mrb[0].mxu0 %v41
    %v678 = vpop.f32.mrb[0].mxu0
    %v679 = vadd.f32 %v560, %v678
    %v680 = vpop.f32.mrb[0].mxu0
    %681 = vmatprep.mubr.f32.mxu0 0.0
    %682 = vmatmul.mubr.f32.gmra.mrb[0].mxu0 %v42
    %v683 = vpop.f32.mrb[0].mxu0
    %v684 = vadd.f32 %v560, %v683
    %v685 = vpop.f32.mrb[0].mxu0
    %686 = vmatprep.mubr.f32.mxu0 0.0
    %687 = vmatmul.mubr.f32.gmra.mrb[0].mxu0 %v43
    %v688 = vpop.f32.mrb[0].mxu0
    %v689 = vadd.f32 %v560, %v688
    %v690 = vpop.f32.mrb[0].mxu0
    %691 = vmatprep.mubr.f32.mxu0 0.0
    %692 = vmatmul.mubr.f32.gmra.mrb[0].mxu0 %v44
    %v693 = vpop.f32.mrb[0].mxu0
    %v694 = vadd.f32 %v560, %v693
    %v695 = vpop.f32.mrb[0].mxu0
    %696 = vmatprep.mubr.f32.mxu0 0.0
    %697 = vmatmul.mubr.f32.gmra.mrb[0].mxu0 %v45
    %v698 = vpop.f32.mrb[0].mxu0
    %v699 = vadd.f32 %v560, %v698
    %v700 = vpop.f32.mrb[0].mxu0
    %701 = vmatprep.mubr.f32.mxu0 0.0
    %702 = vmatmul.mubr.f32.gmra.mrb[0].mxu0 %v46
    %v703 = vpop.f32.mrb[0].mxu0
    %v704 = vadd.f32 %v560, %v703
    %v705 = vpop.f32.mrb[0].mxu0
    %706 = vdwg.mxu0
    %v707 = vmax.f32 %v629, 0.0
    %v708 = vmax.f32 %v634, 0.0
    %v709 = vmax.f32 %v639, 0.0
    %v710 = vmax.f32 %v644, 0.0
    %v711 = vmax.f32 %v649, 0.0
    %v712 = vmax.f32 %v654, 0.0
    %v713 = vmax.f32 %v659, 0.0
    %v714 = vmax.f32 %v664, 0.0
    %v715 = vmax.f32 %v669, 0.0
    %v716 = vmax.f32 %v674, 0.0
    %v717 = vmax.f32 %v679, 0.0
    %v718 = vmax.f32 %v684, 0.0
    %v719 = vmax.f32 %v689, 0.0
    %v720 = vmax.f32 %v694, 0.0
    %v721 = vmax.f32 %v699, 0.0
    %v722 = vmax.f32 %v704, 0.0
    %s723 = scalar_lea.vmem [#allocation2], 256
    %v724 = vld [vmem:[%s723] sm:$0xff]
    %v725 = vld [vmem:[%s723 + $0x8] sm:$0xff]
    %v726 = vld [vmem:[%s723 + $0x10] sm:$0xff]
    %v727 = vld [vmem:[%s723 + $0x18] sm:$0xff]
    %v728 = vld [vmem:[%s723 + $0x20] sm:$0xff]
    %v729 = vld [vmem:[%s723 + $0x28] sm:$0xff]
    %v730 = vld [vmem:[%s723 + $0x30] sm:$0xff]
    %v731 = vld [vmem:[%s723 + $0x38] sm:$0xff]
    %v732 = vld [vmem:[%s723 + $0x40] sm:$0xff]
    %v733 = vld [vmem:[%s723 + $0x48] sm:$0xff]
    %v734 = vld [vmem:[%s723 + $0x50] sm:$0xff]
    %v735 = vld [vmem:[%s723 + $0x58] sm:$0xff]
    %v736 = vld [vmem:[%s723 + $0x60] sm:$0xff]
    %v737 = vld [vmem:[%s723 + $0x68] sm:$0xff]
    %v738 = vld [vmem:[%s723 + $0x70] sm:$0xff]
    %v739 = vld [vmem:[%s723 + $0x78] sm:$0xff]
    %740 = vmatprep.subr.mxu0 0.0
    %741 = vmatpush1.msra.mxu0 %v724
    %742 = vmatprep.subr.mxu0 0.0
    %743 = vmatpush1.msra.mxu0 %v725
    %744 = vmatprep.subr.mxu0 0.0
    %745 = vmatpush1.msra.mxu0 %v726
    %746 = vmatprep.subr.mxu0 0.0
    %747 = vmatpush1.msra.mxu0 %v727
    %748 = vmatprep.subr.mxu0 0.0
    %749 = vmatpush1.msra.mxu0 %v728
    %750 = vmatprep.subr.mxu0 0.0
    %751 = vmatpush1.msra.mxu0 %v729
    %752 = vmatprep.subr.mxu0 0.0
    %753 = vmatpush1.msra.mxu0 %v730
    %754 = vmatprep.subr.mxu0 0.0
    %755 = vmatpush1.msra.mxu0 %v731
    %756 = vmatprep.subr.mxu0 0.0
    %757 = vmatpush1.msra.mxu0 %v732
    %758 = vmatprep.subr.mxu0 0.0
    %759 = vmatpush1.msra.mxu0 %v733
    %760 = vmatprep.subr.mxu0 0.0
    %761 = vmatpush1.msra.mxu0 %v734
    %762 = vmatprep.subr.mxu0 0.0
    %763 = vmatpush1.msra.mxu0 %v735
    %764 = vmatprep.subr.mxu0 0.0
    %765 = vmatpush1.msra.mxu0 %v736
    %766 = vmatprep.subr.mxu0 0.0
    %767 = vmatpush1.msra.mxu0 %v737
    %768 = vmatprep.subr.mxu0 0.0
    %769 = vmatpush1.msra.mxu0 %v738
    %770 = vmatprep.subr.mxu0 0.0
    %771 = vmatpush1.msra.mxu0 %v739
    %772 = vmatprep.subr.mxu0 0.0
    %773 = vmatpush1.msra.mxu0 0.0
    %774 = vmatprep.subr.mxu0 0.0
    %775 = vmatpush1.msra.mxu0 0.0
    %776 = vmatprep.subr.mxu0 0.0
    %777 = vmatpush1.msra.mxu0 0.0
    %778 = vmatprep.subr.mxu0 0.0
    %779 = vmatpush1.msra.mxu0 0.0
    %780 = vmatprep.subr.mxu0 0.0
    %781 = vmatpush1.msra.mxu0 0.0
    %782 = vmatprep.subr.mxu0 0.0
    %783 = vmatpush1.msra.mxu0 0.0
    %784 = vmatprep.subr.mxu0 0.0
    %785 = vmatpush1.msra.mxu0 0.0
    %786 = vmatprep.subr.mxu0 0.0
    %787 = vmatpush1.msra.mxu0 0.0
    %788 = vmatprep.subr.mxu0 0.0
    %789 = vmatpush1.msra.mxu0 0.0
    %790 = vmatprep.subr.mxu0 0.0
    %791 = vmatpush1.msra.mxu0 0.0
    %792 = vmatprep.subr.mxu0 0.0
    %793 = vmatpush1.msra.mxu0 0.0
    %794 = vmatprep.subr.mxu0 0.0
    %795 = vmatpush1.msra.mxu0 0.0
    %796 = vmatprep.subr.mxu0 0.0
    %797 = vmatpush1.msra.mxu0 0.0
    %798 = vmatprep.subr.mxu0 0.0
    %799 = vmatpush1.msra.mxu0 0.0
    %800 = vmatprep.subr.mxu0 0.0
    %801 = vmatpush1.msra.mxu0 0.0
    %802 = vmatprep.subr.mxu0 0.0
    %803 = vmatpush1.msra.mxu0 0.0
    %804 = vmatprep.mubr.f32.mxu0 0.0
    %805 = vmatmul.mubr.f32.gmra.mrb[0].mxu0 %v707
    %v806 = vpop.f32.mrb[0].mxu0
    %v807 = vadd.f32 0.0, %v806
    %v808 = vpop.f32.mrb[0].mxu0
    %809 = vmatprep.mubr.f32.mxu0 0.0
    %810 = vmatmul.mubr.f32.gmra.mrb[0].mxu0 %v708
    %v811 = vpop.f32.mrb[0].mxu0
    %v812 = vadd.f32 0.0, %v811
    %v813 = vpop.f32.mrb[0].mxu0
    %814 = vmatprep.mubr.f32.mxu0 0.0
    %815 = vmatmul.mubr.f32.gmra.mrb[0].mxu0 %v709
    %v816 = vpop.f32.mrb[0].mxu0
    %v817 = vadd.f32 0.0, %v816
    %v818 = vpop.f32.mrb[0].mxu0
    %819 = vmatprep.mubr.f32.mxu0 0.0
    %820 = vmatmul.mubr.f32.gmra.mrb[0].mxu0 %v710
    %v821 = vpop.f32.mrb[0].mxu0
    %v822 = vadd.f32 0.0, %v821
    %v823 = vpop.f32.mrb[0].mxu0
    %824 = vmatprep.mubr.f32.mxu0 0.0
    %825 = vmatmul.mubr.f32.gmra.mrb[0].mxu0 %v711
    %v826 = vpop.f32.mrb[0].mxu0
    %v827 = vadd.f32 0.0, %v826
    %v828 = vpop.f32.mrb[0].mxu0
    %829 = vmatprep.mubr.f32.mxu0 0.0
    %830 = vmatmul.mubr.f32.gmra.mrb[0].mxu0 %v712
    %v831 = vpop.f32.mrb[0].mxu0
    %v832 = vadd.f32 0.0, %v831
    %v833 = vpop.f32.mrb[0].mxu0
    %834 = vmatprep.mubr.f32.mxu0 0.0
    %835 = vmatmul.mubr.f32.gmra.mrb[0].mxu0 %v713
    %v836 = vpop.f32.mrb[0].mxu0
    %v837 = vadd.f32 0.0, %v836
    %v838 = vpop.f32.mrb[0].mxu0
    %839 = vmatprep.mubr.f32.mxu0 0.0
    %840 = vmatmul.mubr.f32.gmra.mrb[0].mxu0 %v714
    %v841 = vpop.f32.mrb[0].mxu0
    %v842 = vadd.f32 0.0, %v841
    %v843 = vpop.f32.mrb[0].mxu0
    %844 = vmatprep.mubr.f32.mxu0 0.0
    %845 = vmatmul.mubr.f32.gmra.mrb[0].mxu0 %v715
    %v846 = vpop.f32.mrb[0].mxu0
    %v847 = vadd.f32 0.0, %v846
    %v848 = vpop.f32.mrb[0].mxu0
    %849 = vmatprep.mubr.f32.mxu0 0.0
    %850 = vmatmul.mubr.f32.gmra.mrb[0].mxu0 %v716
    %v851 = vpop.f32.mrb[0].mxu0
    %v852 = vadd.f32 0.0, %v851
    %v853 = vpop.f32.mrb[0].mxu0
    %854 = vmatprep.mubr.f32.mxu0 0.0
    %855 = vmatmul.mubr.f32.gmra.mrb[0].mxu0 %v717
    %v856 = vpop.f32.mrb[0].mxu0
    %v857 = vadd.f32 0.0, %v856
    %v858 = vpop.f32.mrb[0].mxu0
    %859 = vmatprep.mubr.f32.mxu0 0.0
    %860 = vmatmul.mubr.f32.gmra.mrb[0].mxu0 %v718
    %v861 = vpop.f32.mrb[0].mxu0
    %v862 = vadd.f32 0.0, %v861
    %v863 = vpop.f32.mrb[0].mxu0
    %864 = vmatprep.mubr.f32.mxu0 0.0
    %865 = vmatmul.mubr.f32.gmra.mrb[0].mxu0 %v719
    %v866 = vpop.f32.mrb[0].mxu0
    %v867 = vadd.f32 0.0, %v866
    %v868 = vpop.f32.mrb[0].mxu0
    %869 = vmatprep.mubr.f32.mxu0 0.0
    %870 = vmatmul.mubr.f32.gmra.mrb[0].mxu0 %v720
    %v871 = vpop.f32.mrb[0].mxu0
    %v872 = vadd.f32 0.0, %v871
    %v873 = vpop.f32.mrb[0].mxu0
    %874 = vmatprep.mubr.f32.mxu0 0.0
    %875 = vmatmul.mubr.f32.gmra.mrb[0].mxu0 %v721
    %v876 = vpop.f32.mrb[0].mxu0
    %v877 = vadd.f32 0.0, %v876
    %v878 = vpop.f32.mrb[0].mxu0
    %879 = vmatprep.mubr.f32.mxu0 0.0
    %880 = vmatmul.mubr.f32.gmra.mrb[0].mxu0 %v722
    %v881 = vpop.f32.mrb[0].mxu0
    %v882 = vadd.f32 0.0, %v881
    %v883 = vpop.f32.mrb[0].mxu0
    %884 = vdwg.mxu0
    %s885 = scalar_lea.vmem %s3, 2
    %v886 = vld [vmem:[%s885] sm:$0x1]
    %v888 = vlaneseq
    %v889 = vshrl.u32 %v888, 7
    %v890 = vsub.s32 0, %v889
    %v891 = vrot.slane %v886, %v890
    %893 = vmatprep.subr.mxu0 0.0
    %894 = vmatpush1.msra.mxu0 %v807
    %895 = vmatprep.subr.mxu0 0.0
    %896 = vmatpush1.msra.mxu0 %v812
    %897 = vmatprep.subr.mxu0 0.0
    %898 = vmatpush1.msra.mxu0 %v817
    %899 = vmatprep.subr.mxu0 0.0
    %900 = vmatpush1.msra.mxu0 %v822
    %901 = vmatprep.subr.mxu0 0.0
    %902 = vmatpush1.msra.mxu0 %v827
    %903 = vmatprep.subr.mxu0 0.0
    %904 = vmatpush1.msra.mxu0 %v832
    %905 = vmatprep.subr.mxu0 0.0
    %906 = vmatpush1.msra.mxu0 %v837
    %907 = vmatprep.subr.mxu0 0.0
    %908 = vmatpush1.msra.mxu0 %v842
    %909 = vmatprep.subr.mxu0 0.0
    %910 = vmatpush1.msra.mxu0 %v847
    %911 = vmatprep.subr.mxu0 0.0
    %912 = vmatpush1.msra.mxu0 %v852
    %913 = vmatprep.subr.mxu0 0.0
    %914 = vmatpush1.msra.mxu0 %v857
    %915 = vmatprep.subr.mxu0 0.0
    %916 = vmatpush1.msra.mxu0 %v862
    %917 = vmatprep.subr.mxu0 0.0
    %918 = vmatpush1.msra.mxu0 %v867
    %919 = vmatprep.subr.mxu0 0.0
    %920 = vmatpush1.msra.mxu0 %v872
    %921 = vmatprep.subr.mxu0 0.0
    %922 = vmatpush1.msra.mxu0 %v877
    %923 = vmatprep.subr.mxu0 0.0
    %924 = vmatpush1.msra.mxu0 %v882
    %925 = vmatprep.subr.mxu0 0.0
    %926 = vmatpush1.msra.mxu0 0.0
    %927 = vmatprep.subr.mxu0 0.0
    %928 = vmatpush1.msra.mxu0 0.0
    %929 = vmatprep.subr.mxu0 0.0
    %930 = vmatpush1.msra.mxu0 0.0
    %931 = vmatprep.subr.mxu0 0.0
    %932 = vmatpush1.msra.mxu0 0.0
    %933 = vmatprep.subr.mxu0 0.0
    %934 = vmatpush1.msra.mxu0 0.0
    %935 = vmatprep.subr.mxu0 0.0
    %936 = vmatpush1.msra.mxu0 0.0
    %937 = vmatprep.subr.mxu0 0.0
    %938 = vmatpush1.msra.mxu0 0.0
    %939 = vmatprep.subr.mxu0 0.0
    %940 = vmatpush1.msra.mxu0 0.0
    %941 = vmatprep.subr.mxu0 0.0
    %942 = vmatpush1.msra.mxu0 0.0
    %943 = vmatprep.subr.mxu0 0.0
    %944 = vmatpush1.msra.mxu0 0.0
    %945 = vmatprep.subr.mxu0 0.0
    %946 = vmatpush1.msra.mxu0 0.0
    %947 = vmatprep.subr.mxu0 0.0
    %948 = vmatpush1.msra.mxu0 0.0
    %949 = vmatprep.subr.mxu0 0.0
    %950 = vmatpush1.msra.mxu0 0.0
    %951 = vmatprep.subr.mxu0 0.0
    %952 = vmatpush1.msra.mxu0 0.0
    %953 = vmatprep.subr.mxu0 0.0
    %954 = vmatpush1.msra.mxu0 0.0
    %955 = vmatprep.subr.mxu0 0.0
    %956 = vmatpush1.msra.mxu0 0.0
    %957 = vmatprep.mubr.f32.mxu0 0.0
    %958 = vmatmul.mubr.f32.gmra.mrb[0].mxu0 %v31
    %v959 = vpop.f32.mrb[0].mxu0
    %v960 = vadd.f32 %v891, %v959
    %v961 = vpop.f32.mrb[0].mxu0
    %962 = vmatprep.mubr.f32.mxu0 0.0
    %963 = vmatmul.mubr.f32.gmra.mrb[0].mxu0 %v32
    %v964 = vpop.f32.mrb[0].mxu0
    %v965 = vadd.f32 %v891, %v964
    %v966 = vpop.f32.mrb[0].mxu0
    %967 = vmatprep.mubr.f32.mxu0 0.0
    %968 = vmatmul.mubr.f32.gmra.mrb[0].mxu0 %v33
    %v969 = vpop.f32.mrb[0].mxu0
    %v970 = vadd.f32 %v891, %v969
    %v971 = vpop.f32.mrb[0].mxu0
    %972 = vmatprep.mubr.f32.mxu0 0.0
    %973 = vmatmul.mubr.f32.gmra.mrb[0].mxu0 %v34
    %v974 = vpop.f32.mrb[0].mxu0
    %v975 = vadd.f32 %v891, %v974
    %v976 = vpop.f32.mrb[0].mxu0
    %977 = vmatprep.mubr.f32.mxu0 0.0
    %978 = vmatmul.mubr.f32.gmra.mrb[0].mxu0 %v35
    %v979 = vpop.f32.mrb[0].mxu0
    %v980 = vadd.f32 %v891, %v979
    %v981 = vpop.f32.mrb[0].mxu0
    %982 = vmatprep.mubr.f32.mxu0 0.0
    %983 = vmatmul.mubr.f32.gmra.mrb[0].mxu0 %v36
    %v984 = vpop.f32.mrb[0].mxu0
    %v985 = vadd.f32 %v891, %v984
    %v986 = vpop.f32.mrb[0].mxu0
    %987 = vmatprep.mubr.f32.mxu0 0.0
    %988 = vmatmul.mubr.f32.gmra.mrb[0].mxu0 %v37
    %v989 = vpop.f32.mrb[0].mxu0
    %v990 = vadd.f32 %v891, %v989
    %v991 = vpop.f32.mrb[0].mxu0
    %992 = vmatprep.mubr.f32.mxu0 0.0
    %993 = vmatmul.mubr.f32.gmra.mrb[0].mxu0 %v38
    %v994 = vpop.f32.mrb[0].mxu0
    %v995 = vadd.f32 %v891, %v994
    %v996 = vpop.f32.mrb[0].mxu0
    %997 = vmatprep.mubr.f32.mxu0 0.0
    %998 = vmatmul.mubr.f32.gmra.mrb[0].mxu0 %v39
    %v999 = vpop.f32.mrb[0].mxu0
    %v1000 = vadd.f32 %v891, %v999
    %v1001 = vpop.f32.mrb[0].mxu0
    %1002 = vmatprep.mubr.f32.mxu0 0.0
    %1003 = vmatmul.mubr.f32.gmra.mrb[0].mxu0 %v40
    %v1004 = vpop.f32.mrb[0].mxu0
    %v1005 = vadd.f32 %v891, %v1004
    %v1006 = vpop.f32.mrb[0].mxu0
    %1007 = vmatprep.mubr.f32.mxu0 0.0
    %1008 = vmatmul.mubr.f32.gmra.mrb[0].mxu0 %v41
    %v1009 = vpop.f32.mrb[0].mxu0
    %v1010 = vadd.f32 %v891, %v1009
    %v1011 = vpop.f32.mrb[0].mxu0
    %1012 = vmatprep.mubr.f32.mxu0 0.0
    %1013 = vmatmul.mubr.f32.gmra.mrb[0].mxu0 %v42
    %v1014 = vpop.f32.mrb[0].mxu0
    %v1015 = vadd.f32 %v891, %v1014
    %v1016 = vpop.f32.mrb[0].mxu0
    %1017 = vmatprep.mubr.f32.mxu0 0.0
    %1018 = vmatmul.mubr.f32.gmra.mrb[0].mxu0 %v43
    %v1019 = vpop.f32.mrb[0].mxu0
    %v1020 = vadd.f32 %v891, %v1019
    %v1021 = vpop.f32.mrb[0].mxu0
    %1022 = vmatprep.mubr.f32.mxu0 0.0
    %1023 = vmatmul.mubr.f32.gmra.mrb[0].mxu0 %v44
    %v1024 = vpop.f32.mrb[0].mxu0
    %v1025 = vadd.f32 %v891, %v1024
    %v1026 = vpop.f32.mrb[0].mxu0
    %1027 = vmatprep.mubr.f32.mxu0 0.0
    %1028 = vmatmul.mubr.f32.gmra.mrb[0].mxu0 %v45
    %v1029 = vpop.f32.mrb[0].mxu0
    %v1030 = vadd.f32 %v891, %v1029
    %v1031 = vpop.f32.mrb[0].mxu0
    %1032 = vmatprep.mubr.f32.mxu0 0.0
    %1033 = vmatmul.mubr.f32.gmra.mrb[0].mxu0 %v46
    %v1034 = vpop.f32.mrb[0].mxu0
    %v1035 = vadd.f32 %v891, %v1034
    %v1036 = vpop.f32.mrb[0].mxu0
    %1037 = vdwg.mxu0
    %v1038 = vlaneseq
    %v1039 = vand.u32 %v1038, 127
    %vm1040 = vcmp.lt.s32.totalorder %v1039, 8
    %v1041 = vsel %vm1040, %v960, -inf
    %v1042 = vsel %vm1040, %v965, -inf
    %v1043 = vsel %vm1040, %v970, -inf
    %v1044 = vsel %vm1040, %v975, -inf
    %v1045 = vsel %vm1040, %v980, -inf
    %v1046 = vsel %vm1040, %v985, -inf
    %v1047 = vsel %vm1040, %v990, -inf
    %v1048 = vsel %vm1040, %v995, -inf
    %v1049 = vsel %vm1040, %v1000, -inf
    %v1050 = vsel %vm1040, %v1005, -inf
    %v1051 = vsel %vm1040, %v1010, -inf
    %v1052 = vsel %vm1040, %v1015, -inf
    %v1053 = vsel %vm1040, %v1020, -inf
    %v1054 = vsel %vm1040, %v1025, -inf
    %v1055 = vsel %vm1040, %v1030, -inf
    %v1056 = vsel %vm1040, %v1035, -inf
    %1057 = vmax.xlane.f32.xlu0 %v1041
    %v1058 = vpop.xlane.xlu0 %1057
    %1059 = vmax.xlane.f32.xlu0 %v1042
    %v1060 = vpop.xlane.xlu0 %1059
    %1061 = vmax.xlane.f32.xlu0 %v1043
    %v1062 = vpop.xlane.xlu0 %1061
    %1063 = vmax.xlane.f32.xlu0 %v1044
    %v1064 = vpop.xlane.xlu0 %1063
    %1065 = vmax.xlane.f32.xlu0 %v1045
    %v1066 = vpop.xlane.xlu0 %1065
    %1067 = vmax.xlane.f32.xlu0 %v1046
    %v1068 = vpop.xlane.xlu0 %1067
    %1069 = vmax.xlane.f32.xlu0 %v1047
    %v1070 = vpop.xlane.xlu0 %1069
    %1071 = vmax.xlane.f32.xlu0 %v1048
    %v1072 = vpop.xlane.xlu0 %1071
    %1073 = vmax.xlane.f32.xlu0 %v1049
    %v1074 = vpop.xlane.xlu0 %1073
    %1075 = vmax.xlane.f32.xlu0 %v1050
    %v1076 = vpop.xlane.xlu0 %1075
    %1077 = vmax.xlane.f32.xlu0 %v1051
    %v1078 = vpop.xlane.xlu0 %1077
    %1079 = vmax.xlane.f32.xlu0 %v1052
    %v1080 = vpop.xlane.xlu0 %1079
    %1081 = vmax.xlane.f32.xlu0 %v1053
    %v1082 = vpop.xlane.xlu0 %1081
    %1083 = vmax.xlane.f32.xlu0 %v1054
    %v1084 = vpop.xlane.xlu0 %1083
    %1085 = vmax.xlane.f32.xlu0 %v1055
    %v1086 = vpop.xlane.xlu0 %1085
    %1087 = vmax.xlane.f32.xlu0 %v1056
    %v1088 = vpop.xlane.xlu0 %1087
    %v1089 = vsub.f32 %v1041, %v1058
    %v1090 = vsub.f32 %v1042, %v1060
    %v1091 = vsub.f32 %v1043, %v1062
    %v1092 = vsub.f32 %v1044, %v1064
    %v1093 = vsub.f32 %v1045, %v1066
    %v1094 = vsub.f32 %v1046, %v1068
    %v1095 = vsub.f32 %v1047, %v1070
    %v1096 = vsub.f32 %v1048, %v1072
    %v1097 = vsub.f32 %v1049, %v1074
    %v1098 = vsub.f32 %v1050, %v1076
    %v1099 = vsub.f32 %v1051, %v1078
    %v1100 = vsub.f32 %v1052, %v1080
    %v1101 = vsub.f32 %v1053, %v1082
    %v1102 = vsub.f32 %v1054, %v1084
    %v1103 = vsub.f32 %v1055, %v1086
    %v1104 = vsub.f32 %v1056, %v1088
    %v1105 = vmul.f32 %v1089, 1.442695
    %v1106 = vpow.pop %v1105
    %v1107 = vmul.f32 %v1090, 1.442695
    %v1108 = vpow.pop %v1107
    %v1109 = vmul.f32 %v1091, 1.442695
    %v1110 = vpow.pop %v1109
    %v1111 = vmul.f32 %v1092, 1.442695
    %v1112 = vpow.pop %v1111
    %v1113 = vmul.f32 %v1093, 1.442695
    %v1114 = vpow.pop %v1113
    %v1115 = vmul.f32 %v1094, 1.442695
    %v1116 = vpow.pop %v1115
    %v1117 = vmul.f32 %v1095, 1.442695
    %v1118 = vpow.pop %v1117
    %v1119 = vmul.f32 %v1096, 1.442695
    %v1120 = vpow.pop %v1119
    %v1121 = vmul.f32 %v1097, 1.442695
    %v1122 = vpow.pop %v1121
    %v1123 = vmul.f32 %v1098, 1.442695
    %v1124 = vpow.pop %v1123
    %v1125 = vmul.f32 %v1099, 1.442695
    %v1126 = vpow.pop %v1125
    %v1127 = vmul.f32 %v1100, 1.442695
    %v1128 = vpow.pop %v1127
    %v1129 = vmul.f32 %v1101, 1.442695
    %v1130 = vpow.pop %v1129
    %v1131 = vmul.f32 %v1102, 1.442695
    %v1132 = vpow.pop %v1131
    %v1133 = vmul.f32 %v1103, 1.442695
    %v1134 = vpow.pop %v1133
    %v1135 = vmul.f32 %v1104, 1.442695
    %v1136 = vpow.pop %v1135
    %1137 = vadd.xlane.f32.xlu0 %v1106
    %v1138 = vpop.xlane.xlu0 %1137
    %1139 = vadd.xlane.f32.xlu0 %v1108
    %v1140 = vpop.xlane.xlu0 %1139
    %1141 = vadd.xlane.f32.xlu0 %v1110
    %v1142 = vpop.xlane.xlu0 %1141
    %1143 = vadd.xlane.f32.xlu0 %v1112
    %v1144 = vpop.xlane.xlu0 %1143
    %1145 = vadd.xlane.f32.xlu0 %v1114
    %v1146 = vpop.xlane.xlu0 %1145
    %1147 = vadd.xlane.f32.xlu0 %v1116
    %v1148 = vpop.xlane.xlu0 %1147
    %1149 = vadd.xlane.f32.xlu0 %v1118
    %v1150 = vpop.xlane.xlu0 %1149
    %1151 = vadd.xlane.f32.xlu0 %v1120
    %v1152 = vpop.xlane.xlu0 %1151
    %1153 = vadd.xlane.f32.xlu0 %v1122
    %v1154 = vpop.xlane.xlu0 %1153
    %1155 = vadd.xlane.f32.xlu0 %v1124
    %v1156 = vpop.xlane.xlu0 %1155
    %1157 = vadd.xlane.f32.xlu0 %v1126
    %v1158 = vpop.xlane.xlu0 %1157
    %1159 = vadd.xlane.f32.xlu0 %v1128
    %v1160 = vpop.xlane.xlu0 %1159
    %1161 = vadd.xlane.f32.xlu0 %v1130
    %v1162 = vpop.xlane.xlu0 %1161
    %1163 = vadd.xlane.f32.xlu0 %v1132
    %v1164 = vpop.xlane.xlu0 %1163
    %1165 = vadd.xlane.f32.xlu0 %v1134
    %v1166 = vpop.xlane.xlu0 %1165
    %1167 = vadd.xlane.f32.xlu0 %v1136
    %v1168 = vpop.xlane.xlu0 %1167
    %v1169 = vlog2.pop %v1138
    %v1170 = vmul.f32 %v1169, 0.6931472
    %v1171 = vlog2.pop %v1140
    %v1172 = vmul.f32 %v1171, 0.6931472
    %v1173 = vlog2.pop %v1142
    %v1174 = vmul.f32 %v1173, 0.6931472
    %v1175 = vlog2.pop %v1144
    %v1176 = vmul.f32 %v1175, 0.6931472
    %v1177 = vlog2.pop %v1146
    %v1178 = vmul.f32 %v1177, 0.6931472
    %v1179 = vlog2.pop %v1148
    %v1180 = vmul.f32 %v1179, 0.6931472
    %v1181 = vlog2.pop %v1150
    %v1182 = vmul.f32 %v1181, 0.6931472
    %v1183 = vlog2.pop %v1152
    %v1184 = vmul.f32 %v1183, 0.6931472
    %v1185 = vlog2.pop %v1154
    %v1186 = vmul.f32 %v1185, 0.6931472
    %v1187 = vlog2.pop %v1156
    %v1188 = vmul.f32 %v1187, 0.6931472
    %v1189 = vlog2.pop %v1158
    %v1190 = vmul.f32 %v1189, 0.6931472
    %v1191 = vlog2.pop %v1160
    %v1192 = vmul.f32 %v1191, 0.6931472
    %v1193 = vlog2.pop %v1162
    %v1194 = vmul.f32 %v1193, 0.6931472
    %v1195 = vlog2.pop %v1164
    %v1196 = vmul.f32 %v1195, 0.6931472
    %v1197 = vlog2.pop %v1166
    %v1198 = vmul.f32 %v1197, 0.6931472
    %v1199 = vlog2.pop %v1168
    %v1200 = vmul.f32 %v1199, 0.6931472
    %v1201 = vadd.f32 %v1170, %v1058
    %v1202 = vadd.f32 %v1172, %v1060
    %v1203 = vadd.f32 %v1174, %v1062
    %v1204 = vadd.f32 %v1176, %v1064
    %v1205 = vadd.f32 %v1178, %v1066
    %v1206 = vadd.f32 %v1180, %v1068
    %v1207 = vadd.f32 %v1182, %v1070
    %v1208 = vadd.f32 %v1184, %v1072
    %v1209 = vadd.f32 %v1186, %v1074
    %v1210 = vadd.f32 %v1188, %v1076
    %v1211 = vadd.f32 %v1190, %v1078
    %v1212 = vadd.f32 %v1192, %v1080
    %v1213 = vadd.f32 %v1194, %v1082
    %v1214 = vadd.f32 %v1196, %v1084
    %v1215 = vadd.f32 %v1198, %v1086
    %v1216 = vadd.f32 %v1200, %v1088
    %v1217 = vsub.f32 %v960, %v1201
    %v1218 = vsub.f32 %v965, %v1202
    %v1219 = vsub.f32 %v970, %v1203
    %v1220 = vsub.f32 %v975, %v1204
    %v1221 = vsub.f32 %v980, %v1205
    %v1222 = vsub.f32 %v985, %v1206
    %v1223 = vsub.f32 %v990, %v1207
    %v1224 = vsub.f32 %v995, %v1208
    %v1225 = vsub.f32 %v1000, %v1209
    %v1226 = vsub.f32 %v1005, %v1210
    %v1227 = vsub.f32 %v1010, %v1211
    %v1228 = vsub.f32 %v1015, %v1212
    %v1229 = vsub.f32 %v1020, %v1213
    %v1230 = vsub.f32 %v1025, %v1214
    %v1231 = vsub.f32 %v1030, %v1215
    %v1232 = vsub.f32 %v1035, %v1216
    %1233 = vst [vmem:[%s4] sm:$0xff] %v1217
    %1234 = vst [vmem:[%s4 + $0x8] sm:$0xff] %v1218
    %1235 = vst [vmem:[%s4 + $0x10] sm:$0xff] %v1219
    %1236 = vst [vmem:[%s4 + $0x18] sm:$0xff] %v1220
    %1237 = vst [vmem:[%s4 + $0x20] sm:$0xff] %v1221
    %1238 = vst [vmem:[%s4 + $0x28] sm:$0xff] %v1222
    %1239 = vst [vmem:[%s4 + $0x30] sm:$0xff] %v1223
    %1240 = vst [vmem:[%s4 + $0x38] sm:$0xff] %v1224
    %1241 = vst [vmem:[%s4 + $0x40] sm:$0xff] %v1225
    %1242 = vst [vmem:[%s4 + $0x48] sm:$0xff] %v1226
    %1243 = vst [vmem:[%s4 + $0x50] sm:$0xff] %v1227
    %1244 = vst [vmem:[%s4 + $0x58] sm:$0xff] %v1228
    %1245 = vst [vmem:[%s4 + $0x60] sm:$0xff] %v1229
    %1246 = vst [vmem:[%s4 + $0x68] sm:$0xff] %v1230
    %1247 = vst [vmem:[%s4 + $0x70] sm:$0xff] %v1231
    %1248 = vst [vmem:[%s4 + $0x78] sm:$0xff] %v1232
    // Predicated region
    $region22: #{_gcn_forward_impl.1} parent=1 // pred_check
      _
    $region23: #{_gcn_forward_impl.1} parent=1 // pred_check_branch
      %1250 = sbr.rel (0) target = $region25
    $region24: #{_gcn_forward_impl.1} parent=1 // pred_region
      _
    $region25: #{_gcn_forward_impl.1} parent=1 // pred_fallthru
      _
    // Predicated region
    $region26: #{_gcn_forward_impl.1} parent=1 // pred_check
      _
    $region27: #{_gcn_forward_impl.1} parent=1 // pred_check_branch
      %1252 = sbr.rel (0) target = $region29
    $region28: #{_gcn_forward_impl.1} parent=1 // pred_region
      _
    $region29: #{_gcn_forward_impl.1} parent=1 // pred_fallthru
      _
    %1253 = vsyncpa [#allocation3], 1

</llo_original>
